<compile_context>
chip_gen: v7x
topology: tpu7x:2x2x1
jax: 0.10.0
libtpu: 0.0.40
codegen_flags: <defaults>
</compile_context>

<pallas_src>
import jax
import jax.numpy as jnp
from jax.experimental import pallas as pl
from jax.experimental.pallas import tpu as pltpu


def _round_up(x: int, m: int) -> int:
    return ((x + m - 1) // m) * m


# --------------------------------------------------------------------------------------
# Kernel: one (batch, point-tile) block of the weak-perspective projection.
#   proj_xy = R[:2] p + t[:2]
#   den     = R[2]  p + t[2]
#   img     = proj_xy / den
#   out     = K @ img + principal_point
# --------------------------------------------------------------------------------------
def _weak_perspective_kernel(params_ref, p_ref, o_ref):
    # params_ref : [B, 18] f32 in SMEM.  Per-batch row layout:
    #              [0:9]   R (row-major 3x3)
    #              [9:12]  t
    #              [12:16] K (row-major 2x2)
    #              [16:18] principal point (cx, cy)
    # p_ref      : (1, 3, TS, L) channel-major point block (coord, sublane, lane)
    # o_ref      : (1, 2, TS, L) projected 2D point block
    bi = pl.program_id(0)

    px = p_ref[0, 0].astype(jnp.float32)          # (TS, L) fully dense plane
    py = p_ref[0, 1].astype(jnp.float32)
    pz = p_ref[0, 2].astype(jnp.float32)

    r00 = params_ref[bi, 0]; r01 = params_ref[bi, 1]; r02 = params_ref[bi, 2]
    r10 = params_ref[bi, 3]; r11 = params_ref[bi, 4]; r12 = params_ref[bi, 5]
    r20 = params_ref[bi, 6]; r21 = params_ref[bi, 7]; r22 = params_ref[bi, 8]
    t0 = params_ref[bi, 9]; t1 = params_ref[bi, 10]; t2 = params_ref[bi, 11]
    k00 = params_ref[bi, 12]; k01 = params_ref[bi, 13]
    k10 = params_ref[bi, 14]; k11 = params_ref[bi, 15]
    cx = params_ref[bi, 16]; cy = params_ref[bi, 17]

    num_x = r00 * px + r01 * py + r02 * pz + t0
    num_y = r10 * px + r11 * py + r12 * pz + t1
    den = r20 * px + r21 * py + r22 * pz + t2

    # Exact f32 divide (matches torch.div).  The kernel is memory-bound, so the
    # multi-op f32 divide on the VALU is hidden behind the HBM DMAs; the previous
    # approx-reciprocal path was the source of the accuracy failure.
    ix = num_x / den
    iy = num_y / den

    o_ref[0, 0] = (k00 * ix + k01 * iy + cx).astype(o_ref.dtype)
    o_ref[0, 1] = (k10 * ix + k11 * iy + cy).astype(o_ref.dtype)


def _project_pallas(points, rotation, translation, intrinsic2x2, principal_point,
                    *, lane=512, rows_per_tile=32):
    """points: [B, N, 3]; rotation: [B,3,3]; translation: [B,3];
    intrinsic2x2: [B,2,2]; principal_point: [B,2].  Returns [B, N, 2]."""
    B, N, _ = points.shape
    out_dtype = points.dtype

    # ---- pack all per-batch scalars into one tiny SMEM table ----
    Rf = rotation.astype(jnp.float32).reshape(B, 9)
    tf = translation.astype(jnp.float32).reshape(B, 3)
    Kf = intrinsic2x2.astype(jnp.float32).reshape(B, 4)
    cf = principal_point.astype(jnp.float32).reshape(B, 2)
    params = jnp.concatenate([Rf, tf, Kf, cf], axis=1)               # [B,18] f32

    # ---- lane/sublane-dense tiling of the point axis ----
    lane = max(128, min(lane, _round_up(N, 128)))                    # multiple of 128
    n_rows = -(-N // lane)                                           # cdiv
    rows_per_tile = max(8, min(_round_up(rows_per_tile, 8), _round_up(n_rows, 8)))
    n_rows_pad = _round_up(n_rows, rows_per_tile)
    n_pad = n_rows_pad * lane
    grid_n = n_rows_pad // rows_per_tile

    # channel-major (single fused XLA transpose) + pad + split the point axis
    p_cm = jnp.transpose(points, (0, 2, 1))                          # [B,3,N]
    if n_pad != N:
        p_cm = jnp.pad(p_cm, ((0, 0), (0, 0), (0, n_pad - N)), constant_values=1.0)
    p4 = p_cm.reshape(B, 3, n_rows_pad, lane)                        # [B,3,rows,lane]

    out4 = pl.pallas_call(
        _weak_perspective_kernel,
        out_shape=jax.ShapeDtypeStruct((B, 2, n_rows_pad, lane), out_dtype),
        grid_spec=pltpu.PrefetchScalarGridSpec(
            num_scalar_prefetch=0,
            grid=(B, grid_n),
            in_specs=[
                pl.BlockSpec(memory_space=pltpu.MemorySpace.SMEM),   # params [B,18]
                pl.BlockSpec((1, 3, rows_per_tile, lane),
                             lambda b, n: (b, 0, n, 0)),             # points
            ],
            out_specs=pl.BlockSpec((1, 2, rows_per_tile, lane),
                                   lambda b, n: (b, 0, n, 0)),
        ),
        compiler_params=pltpu.CompilerParams(
            dimension_semantics=("parallel", "parallel")),
    )(params, p4)

    out = out4.reshape(B, 2, n_pad)[:, :, :N]
    return jnp.transpose(out, (0, 2, 1))                             # [B, N, 2]


# --------------------------------------------------------------------------------------
# Module-equivalent wrapper (parameters initialized as in WeakPerspective.__init__).
# --------------------------------------------------------------------------------------
class WeakPerspectiveJax:
    def __init__(self, focal_length=5000.0, principal_point=0.5,
                 width=None, height=None, rotation=None, translation=None):
        fx = focal_length if isinstance(focal_length, float) else focal_length[0]
        fy = focal_length if isinstance(focal_length, float) else focal_length[1]
        self.mat = jnp.array([[[fx, 0.0], [0.0, fy]]], dtype=jnp.float32)       # [1,2,2]
        if principal_point is None:
            cx, cy = float(width // 2), float(height // 2)
        else:
            cx = principal_point if isinstance(principal_point, float) else principal_point[0]
            cy = principal_point if isinstance(principal_point, float) else principal_point[1]
        self.principal_point = jnp.array([[cx, cy]], dtype=jnp.float32)         # [1,2]
        self.rotation = (jnp.eye(3, dtype=jnp.float32)[None]
                         if rotation is None else jnp.asarray(rotation, jnp.float32))       # [1,3,3]
        self.translation = (jnp.zeros((1, 3), jnp.float32)
                            if translation is None else jnp.asarray(translation, jnp.float32))  # [1,3]

    def __call__(self, points, image=None, rotation=None, translation=None, intrinsics=None):
        B = points.shape[0]
        pp = self.principal_point
        if image is not None:
            h, w = image.shape[-2], image.shape[-1]
            pp = jnp.array([[float(w // 2), float(h // 2)]], dtype=jnp.float32)
        R = rotation if rotation is not None else jnp.broadcast_to(self.rotation, (B, 3, 3))
        t = translation if translation is not None else jnp.broadcast_to(self.translation, (B, 3))
        if intrinsics is not None:
            K = intrinsics[:, :2, :2]
            pp_b = intrinsics[:, :2, 2]
        else:
            K = jnp.broadcast_to(self.mat, (B, 2, 2))
            pp_b = jnp.broadcast_to(pp, (B, 2))
        return _project_pallas(points, R, t, K, pp_b)


def _reference(points, R, t, K, pp):
    # Pure-JAX reference mirroring the torch einsum chain exactly.
    # HIGHEST precision so the f32 reference matmuls are not demoted to bf16 on TPU.
    hi = jax.lax.Precision.HIGHEST
    z = jnp.ones_like(points[..., :1])
    hp = jnp.concatenate([points, z], axis=-1)                                   # [B,N,4]
    top = jnp.concatenate([R, t[..., None]], axis=2)                             # [B,3,4]
    bot = jnp.broadcast_to(jnp.array([[[0., 0., 0., 1.]]], jnp.float32),
                           (points.shape[0], 1, 4))
    ct = jnp.concatenate([top, bot], axis=1)                                     # [B,4,4]
    proj = jnp.einsum('bki,bji->bjk', ct, hp, precision=hi)                      # [B,N,4]
    img = proj[:, :, :2] / proj[:, :, 2:3]
    return jnp.einsum('bki,bji->bjk', K, img, precision=hi) + pp[:, None, :]


if __name__ == "__main__":
    key = jax.random.PRNGKey(0)
    B, N = 2, 200
    kxy, kz = jax.random.split(key)
    xy = jax.random.normal(kxy, (B, N, 2), dtype=jnp.float32)
    z = 2.0 + jax.random.uniform(kz, (B, N, 1), dtype=jnp.float32)               # keep z away from 0
    points = jnp.concatenate([xy, z], axis=-1)                                   # [B, N, 3]

    module = WeakPerspectiveJax()                                                # f=5000, c=0.5, R=I, t=0
    out = jax.block_until_ready(module(points))

    ref = _reference(points,
                     jnp.broadcast_to(module.rotation, (B, 3, 3)),
                     jnp.broadcast_to(module.translation, (B, 3)),
                     jnp.broadcast_to(module.mat, (B, 2, 2)),
                     jnp.broadcast_to(module.principal_point, (B, 2)))
    assert out.shape == (B, N, 2)
    assert jnp.allclose(out, ref, rtol=1e-5, atol=1e-3), float(jnp.max(jnp.abs(out - ref)))

    # Second check: non-trivial rotation / translation.
    kr, _ = jax.random.split(kz)
    Rrand = jnp.eye(3, dtype=jnp.float32)[None] + 0.05 * jax.random.normal(kr, (B, 3, 3), jnp.float32)
    trand = jnp.array([[0.1, -0.2, 3.0], [0.0, 0.3, 4.0]], dtype=jnp.float32)
    out2 = jax.block_until_ready(module(points, rotation=Rrand, translation=trand))
    ref2 = _reference(points, Rrand, trand,
                      jnp.broadcast_to(module.mat, (B, 2, 2)),
                      jnp.broadcast_to(module.principal_point, (B, 2)))
    assert jnp.allclose(out2, ref2, rtol=1e-5, atol=1e-3), float(jnp.max(jnp.abs(out2 - ref2)))

    print("KERNEL_OK")
</pallas_src>

<mosaic_0001>
module attributes {stable_mosaic.version = 11 : i64} {
  func.func @_weak_perspective_kernel(%arg0: i32, %arg1: i32, %arg2: memref<2x18xf32, #tpu.memory_space<smem>>, %arg3: memref<1x3x8x256xf32, #tpu.memory_space<vmem>>, %arg4: memref<1x2x8x256xf32, #tpu.memory_space<vmem>>) attributes {dimension_semantics = [#tpu.dimension_semantics<parallel>, #tpu.dimension_semantics<parallel>], iteration_bounds = array<i64: 2, 1>, scalar_prefetch = 0 : i64, scratch_operands = 0 : i64, tpu.core_type = #tpu.core_type<tc>, window_params = [{transform_indices = @transform_0, window_bounds = array<i64: 2, 18>}, {transform_indices = @transform_1, window_bounds = array<i64: 1, 3, 8, 256>}, {transform_indices = @transform_2, window_bounds = array<i64: 1, 2, 8, 256>}]} {
    %c0 = arith.constant 0 : index
    %c0_0 = arith.constant 0 : index
    %c0_1 = arith.constant 0 : index
    %c0_2 = arith.constant 0 : index
    %0 = vector.load %arg3[%c0, %c0_0, %c0_1, %c0_2] : memref<1x3x8x256xf32, #tpu.memory_space<vmem>>, vector<1x1x8x256xf32>
    %1 = vector.shape_cast %0 : vector<1x1x8x256xf32> to vector<8x256xf32>
    %c0_3 = arith.constant 0 : index
    %c1 = arith.constant 1 : index
    %c0_4 = arith.constant 0 : index
    %c0_5 = arith.constant 0 : index
    %2 = vector.load %arg3[%c0_3, %c1, %c0_4, %c0_5] : memref<1x3x8x256xf32, #tpu.memory_space<vmem>>, vector<1x1x8x256xf32>
    %3 = vector.shape_cast %2 : vector<1x1x8x256xf32> to vector<8x256xf32>
    %c0_6 = arith.constant 0 : index
    %c2 = arith.constant 2 : index
    %c0_7 = arith.constant 0 : index
    %c0_8 = arith.constant 0 : index
    %4 = vector.load %arg3[%c0_6, %c2, %c0_7, %c0_8] : memref<1x3x8x256xf32, #tpu.memory_space<vmem>>, vector<1x1x8x256xf32>
    %5 = vector.shape_cast %4 : vector<1x1x8x256xf32> to vector<8x256xf32>
    %6 = arith.index_cast %arg0 : i32 to index
    %c0_9 = arith.constant 0 : index
    %7 = memref.load %arg2[%6, %c0_9] : memref<2x18xf32, #tpu.memory_space<smem>>
    %8 = arith.index_cast %arg0 : i32 to index
    %c1_10 = arith.constant 1 : index
    %9 = memref.load %arg2[%8, %c1_10] : memref<2x18xf32, #tpu.memory_space<smem>>
    %10 = arith.index_cast %arg0 : i32 to index
    %c2_11 = arith.constant 2 : index
    %11 = memref.load %arg2[%10, %c2_11] : memref<2x18xf32, #tpu.memory_space<smem>>
    %12 = arith.index_cast %arg0 : i32 to index
    %c3 = arith.constant 3 : index
    %13 = memref.load %arg2[%12, %c3] : memref<2x18xf32, #tpu.memory_space<smem>>
    %14 = arith.index_cast %arg0 : i32 to index
    %c4 = arith.constant 4 : index
    %15 = memref.load %arg2[%14, %c4] : memref<2x18xf32, #tpu.memory_space<smem>>
    %16 = arith.index_cast %arg0 : i32 to index
    %c5 = arith.constant 5 : index
    %17 = memref.load %arg2[%16, %c5] : memref<2x18xf32, #tpu.memory_space<smem>>
    %18 = arith.index_cast %arg0 : i32 to index
    %c6 = arith.constant 6 : index
    %19 = memref.load %arg2[%18, %c6] : memref<2x18xf32, #tpu.memory_space<smem>>
    %20 = arith.index_cast %arg0 : i32 to index
    %c7 = arith.constant 7 : index
    %21 = memref.load %arg2[%20, %c7] : memref<2x18xf32, #tpu.memory_space<smem>>
    %22 = arith.index_cast %arg0 : i32 to index
    %c8 = arith.constant 8 : index
    %23 = memref.load %arg2[%22, %c8] : memref<2x18xf32, #tpu.memory_space<smem>>
    %24 = arith.index_cast %arg0 : i32 to index
    %c9 = arith.constant 9 : index
    %25 = memref.load %arg2[%24, %c9] : memref<2x18xf32, #tpu.memory_space<smem>>
    %26 = arith.index_cast %arg0 : i32 to index
    %c10 = arith.constant 10 : index
    %27 = memref.load %arg2[%26, %c10] : memref<2x18xf32, #tpu.memory_space<smem>>
    %28 = arith.index_cast %arg0 : i32 to index
    %c11 = arith.constant 11 : index
    %29 = memref.load %arg2[%28, %c11] : memref<2x18xf32, #tpu.memory_space<smem>>
    %30 = arith.index_cast %arg0 : i32 to index
    %c12 = arith.constant 12 : index
    %31 = memref.load %arg2[%30, %c12] : memref<2x18xf32, #tpu.memory_space<smem>>
    %32 = arith.index_cast %arg0 : i32 to index
    %c13 = arith.constant 13 : index
    %33 = memref.load %arg2[%32, %c13] : memref<2x18xf32, #tpu.memory_space<smem>>
    %34 = arith.index_cast %arg0 : i32 to index
    %c14 = arith.constant 14 : index
    %35 = memref.load %arg2[%34, %c14] : memref<2x18xf32, #tpu.memory_space<smem>>
    %36 = arith.index_cast %arg0 : i32 to index
    %c15 = arith.constant 15 : index
    %37 = memref.load %arg2[%36, %c15] : memref<2x18xf32, #tpu.memory_space<smem>>
    %38 = arith.index_cast %arg0 : i32 to index
    %c16 = arith.constant 16 : index
    %39 = memref.load %arg2[%38, %c16] : memref<2x18xf32, #tpu.memory_space<smem>>
    %40 = arith.index_cast %arg0 : i32 to index
    %c17 = arith.constant 17 : index
    %41 = memref.load %arg2[%40, %c17] : memref<2x18xf32, #tpu.memory_space<smem>>
    %42 = vector.broadcast %7 : f32 to vector<8x256xf32>
    %43 = arith.mulf %42, %1 : vector<8x256xf32>
    %44 = vector.broadcast %9 : f32 to vector<8x256xf32>
    %45 = arith.mulf %44, %3 : vector<8x256xf32>
    %46 = arith.addf %43, %45 : vector<8x256xf32>
    %47 = vector.broadcast %11 : f32 to vector<8x256xf32>
    %48 = arith.mulf %47, %5 : vector<8x256xf32>
    %49 = arith.addf %46, %48 : vector<8x256xf32>
    %50 = vector.broadcast %25 : f32 to vector<8x256xf32>
    %51 = arith.addf %49, %50 : vector<8x256xf32>
    %52 = vector.broadcast %13 : f32 to vector<8x256xf32>
    %53 = arith.mulf %52, %1 : vector<8x256xf32>
    %54 = vector.broadcast %15 : f32 to vector<8x256xf32>
    %55 = arith.mulf %54, %3 : vector<8x256xf32>
    %56 = arith.addf %53, %55 : vector<8x256xf32>
    %57 = vector.broadcast %17 : f32 to vector<8x256xf32>
    %58 = arith.mulf %57, %5 : vector<8x256xf32>
    %59 = arith.addf %56, %58 : vector<8x256xf32>
    %60 = vector.broadcast %27 : f32 to vector<8x256xf32>
    %61 = arith.addf %59, %60 : vector<8x256xf32>
    %62 = vector.broadcast %19 : f32 to vector<8x256xf32>
    %63 = arith.mulf %62, %1 : vector<8x256xf32>
    %64 = vector.broadcast %21 : f32 to vector<8x256xf32>
    %65 = arith.mulf %64, %3 : vector<8x256xf32>
    %66 = arith.addf %63, %65 : vector<8x256xf32>
    %67 = vector.broadcast %23 : f32 to vector<8x256xf32>
    %68 = arith.mulf %67, %5 : vector<8x256xf32>
    %69 = arith.addf %66, %68 : vector<8x256xf32>
    %70 = vector.broadcast %29 : f32 to vector<8x256xf32>
    %71 = arith.addf %69, %70 : vector<8x256xf32>
    %72 = arith.divf %51, %71 : vector<8x256xf32>
    %73 = arith.divf %61, %71 : vector<8x256xf32>
    %74 = vector.broadcast %31 : f32 to vector<8x256xf32>
    %75 = arith.mulf %74, %72 : vector<8x256xf32>
    %76 = vector.broadcast %33 : f32 to vector<8x256xf32>
    %77 = arith.mulf %76, %73 : vector<8x256xf32>
    %78 = arith.addf %75, %77 : vector<8x256xf32>
    %79 = vector.broadcast %39 : f32 to vector<8x256xf32>
    %80 = arith.addf %78, %79 : vector<8x256xf32>
    %c0_12 = arith.constant 0 : index
    %c0_13 = arith.constant 0 : index
    %c0_14 = arith.constant 0 : index
    %c0_15 = arith.constant 0 : index
    %81 = vector.load %arg4[%c0_12, %c0_13, %c0_14, %c0_15] : memref<1x2x8x256xf32, #tpu.memory_space<vmem>>, vector<1x1x8x256xf32>
    %82 = vector.shape_cast %81 : vector<1x1x8x256xf32> to vector<8x256xf32>
    %83 = vector.shape_cast %80 : vector<8x256xf32> to vector<1x1x8x256xf32>
    tpu.vector_store %arg4[%c0_12, %c0_13, %c0_14, %c0_15], %83 {strides = array<i32>} : memref<1x2x8x256xf32, #tpu.memory_space<vmem>>, vector<1x1x8x256xf32>,
    %84 = vector.broadcast %35 : f32 to vector<8x256xf32>
    %85 = arith.mulf %84, %72 : vector<8x256xf32>
    %86 = vector.broadcast %37 : f32 to vector<8x256xf32>
    %87 = arith.mulf %86, %73 : vector<8x256xf32>
    %88 = arith.addf %85, %87 : vector<8x256xf32>
    %89 = vector.broadcast %41 : f32 to vector<8x256xf32>
    %90 = arith.addf %88, %89 : vector<8x256xf32>
    %c0_16 = arith.constant 0 : index
    %c1_17 = arith.constant 1 : index
    %c0_18 = arith.constant 0 : index
    %c0_19 = arith.constant 0 : index
    %91 = vector.load %arg4[%c0_16, %c1_17, %c0_18, %c0_19] : memref<1x2x8x256xf32, #tpu.memory_space<vmem>>, vector<1x1x8x256xf32>
    %92 = vector.shape_cast %91 : vector<1x1x8x256xf32> to vector<8x256xf32>
    %93 = vector.shape_cast %90 : vector<8x256xf32> to vector<1x1x8x256xf32>
    tpu.vector_store %arg4[%c0_16, %c1_17, %c0_18, %c0_19], %93 {strides = array<i32>} : memref<1x2x8x256xf32, #tpu.memory_space<vmem>>, vector<1x1x8x256xf32>,
    return
  }
  func.func @transform_0(%arg0: i32, %arg1: i32) -> (i32, i32) {
    %c0_i32 = arith.constant 0 : i32
    %c0_i32_0 = arith.constant 0 : i32
    %c0_i32_1 = arith.constant 0 : i32
    return %c0_i32, %c0_i32_0 : i32, i32
  }
  func.func @transform_1(%arg0: i32, %arg1: i32) -> (i32, i32, i32, i32) {
    %c0_i32 = arith.constant 0 : i32
    %c0_i32_0 = arith.constant 0 : i32
    %c0_i32_1 = arith.constant 0 : i32
    return %arg0, %c0_i32, %arg1, %c0_i32_0 : i32, i32, i32, i32
  }
  func.func @transform_2(%arg0: i32, %arg1: i32) -> (i32, i32, i32, i32) {
    %c0_i32 = arith.constant 0 : i32
    %c0_i32_0 = arith.constant 0 : i32
    %c0_i32_1 = arith.constant 0 : i32
    return %arg0, %c0_i32, %arg1, %c0_i32_0 : i32, i32, i32, i32
  }
}

</mosaic_0001>

<llo_original>
// kernel: tpu_custom_call.1
$region0: #{tpu_custom_call.1}
  #allocation0 [shape = 'u32[]', space=smem, size = 0x4, offset = 0x4, fixed_abs, tag = 'smem constant byte address 0x4 - core index']
  #allocation1 [shape = 'u32[144,128]{1,0:T(1,128)}', space=vmem, size = 0x12000, scoped, tag = 'internal scratch']
  %s0 = inlined_call_operand.hbm [shape: f32[2,18], index: 0, kind: input, shape index: {}]
  %s1 = inlined_call_operand.hbm [shape: f32[2,3,8,256], index: 1, kind: input, shape index: {}]
  %s2 = inlined_call_operand.hbm [shape: f32[2,2,8,256], index: 2, kind: output, shape index: {}]
  %s3 = sld [smem:[#allocation0]]
  $region49: #{tpu_custom_call.1} parent=0
    _
  %s5 = ssub.s32 1, %s3
  %s6 = scalar_select 0, %s5, %s3
  $region1: #{tpu_custom_call.1} parent=0
    #allocation2 [shape = 'u8[1024]{0}', space=smem, size = 0x400, scoped, tag = 'input window, operand 0, single buffered']
    #allocation3 [shape = 's32[2]{0}', space=sflag, size = 0x8, scoped, tag = 'scoped memory for tpu_custom_call.1']
    #allocation4 [shape = 's32[2]{0}', space=sflag, size = 0x8, scoped, tag = 'scoped memory for tpu_custom_call.1']
    #allocation5 [shape = 's32[2]{0}', space=sflag, size = 0x8, scoped, tag = 'scoped memory for tpu_custom_call.1']
    #allocation6 [shape = 'u8[49152]{0}', space=vmem, size = 0xc000, scoped, tag = 'input window, operand 1']
    #allocation7 [shape = 'u8[32768]{0}', space=vmem, size = 0x8000, scoped, tag = 'output window, operand 0']
    %7 = vsyncpa [#allocation5], 0
    %8 = vsyncpa [#allocation3], 0
    %s9 = scalar_lea.sflag [#allocation3], 1
    %10 = vsyncpa %s9, 0
    %11 = vsyncpa [#allocation4], 0
    %s12 = scalar_lea.sflag [#allocation4], 1
    %13 = vsyncpa %s12, 0
    loop: start=0, step=1, limit=4
    $region2: #{tpu_custom_call.1} parent=1 // loop_pre_header
      _
    $region3: #{tpu_custom_call.1} parent=1 // loop_header
      %s15 = sphi 0, %s19
      %p16 = scmp.ge.s32.totalorder %s15, 4
      %s22 = sphi 0, %s34
      %s23 = sphi 0, %s30
      %s24 = sphi 0, %s22
      %s25 = sphi 0, %s23
      %s26 = sphi 0, %s24
      %s27 = sphi 0, %s25
      %s35 = sphi 0, %s35
      %s37 = sphi 0, %s35
      %s38 = sphi 0, %s37
      %s52 = sphi 0, %s38
      %s60 = sphi 0, %s62
      %s63 = sphi 0, %s60
      %s64 = sphi 0, %s63
      %s80 = sphi 0, %s64
      %s88 = sphi 0, %s90
      %s91 = sphi 0, %s88
      %s92 = sphi 0, %s91
      %s108 = sphi 0, %s92
    $region4: #{tpu_custom_call.1} parent=1 // loop_header_branch
      %18 = sbr.rel (%p16) target = $region8
    $region5: #{tpu_custom_call.1} parent=1 // loop_body
      %s20 = ssub.s32 %s15, 1
      %s21 = ssub.s32 %s15, 2
      %s28 = sadd.s32 1, %s23
      %p29 = scmp.ge.s32.totalorder %s28, 1
      %s30 = scalar_select %p29, 0, %s28
      %s31 = sadd.s32 1, %s22
      %s32 = scalar_select %p29, %s31, %s22
      %p33 = scmp.ge.s32.totalorder %s32, 2
      %s34 = scalar_select %p33, 0, %s32
      %s36 = sadd.s32 %s35, 1
      %p39 = scmp.eq.s32.totalorder %s15, 1
      %p40 = scmp.ne.s32.totalorder %s35, %s37
      %p41 = scmp.eq.s32.totalorder %s15, 0
      %p42 = por %p40, %p41
      %p43 = scmp.ne.s32.totalorder %s35, %s37
      %p44 = scmp.eq.s32.totalorder %s20, 1
      %p45 = por %p43, %p44
      %p46 = scmp.ne.s32.totalorder %s37, %s38
      %p47 = scmp.eq.s32.totalorder %s20, 0
      %p48 = por %p46, %p47
      %p49 = scmp.ne.s32.totalorder %s37, %s38
      %p50 = scmp.eq.s32.totalorder %s21, 1
      %p51 = por %p49, %p50
      %p53 = scmp.ne.s32.totalorder %s38, %s52
      %p54 = scmp.eq.s32.totalorder %s21, 0
      %p55 = por %p53, %p54
      %s56 = ssub.s32 %s22, %s34
      %s57 = ssub.s32 %s23, %s30
      %s58 = sor.u32 %s56, %s57
      %p59 = scmp.eq.s32.totalorder %s58, 0
      %s61 = sadd.s32 %s60, 1
      %s62 = scalar_select %p59, %s60, %s61
      %p65 = pneg %p59
      %p66 = scmp.eq.s32.totalorder %s15, 1
      %p67 = por %p65, %p66
      %p68 = scmp.ne.s32.totalorder %s60, %s63
      %p69 = scmp.eq.s32.totalorder %s15, 0
      %p70 = por %p68, %p69
      %p71 = scmp.ne.s32.totalorder %s60, %s63
      %p72 = scmp.eq.s32.totalorder %s20, 1
      %p73 = por %p71, %p72
      %p74 = scmp.ne.s32.totalorder %s63, %s64
      %p75 = scmp.eq.s32.totalorder %s20, 0
      %p76 = por %p74, %p75
      %p77 = scmp.ne.s32.totalorder %s63, %s64
      %p78 = scmp.eq.s32.totalorder %s21, 1
      %p79 = por %p77, %p78
      %p81 = scmp.ne.s32.totalorder %s64, %s80
      %p82 = scmp.eq.s32.totalorder %s21, 0
      %p83 = por %p81, %p82
      %s84 = ssub.s32 %s22, %s34
      %s85 = ssub.s32 %s23, %s30
      %s86 = sor.u32 %s84, %s85
      %p87 = scmp.eq.s32.totalorder %s86, 0
      %s89 = sadd.s32 %s88, 1
      %s90 = scalar_select %p87, %s88, %s89
      %p93 = pneg %p87
      %p94 = scmp.eq.s32.totalorder %s15, 1
      %p95 = por %p93, %p94
      %p96 = scmp.ne.s32.totalorder %s88, %s91
      %p97 = scmp.eq.s32.totalorder %s15, 0
      %p98 = por %p96, %p97
      %p99 = scmp.ne.s32.totalorder %s88, %s91
      %p100 = scmp.eq.s32.totalorder %s20, 1
      %p101 = por %p99, %p100
      %p102 = scmp.ne.s32.totalorder %s91, %s92
      %p103 = scmp.eq.s32.totalorder %s20, 0
      %p104 = por %p102, %p103
      %p105 = scmp.ne.s32.totalorder %s91, %s92
      %p106 = scmp.eq.s32.totalorder %s21, 1
      %p107 = por %p105, %p106
      %p109 = scmp.ne.s32.totalorder %s92, %s108
      %p110 = scmp.eq.s32.totalorder %s21, 0
      %p111 = por %p109, %p110
      %p112 = scmp.le.s32.totalorder 1, %s15
      %p113 = scmp.lt.s32.totalorder %s15, 3
      %p114 = pnand %p112, %p113
      %p115 = pneg %p114
      // Predicated region
      $region9: #{tpu_custom_call.1} parent=5 // pred_check
        _
      $region10: #{tpu_custom_call.1} parent=5 // pred_check_branch
        %117 = sbr.rel (%p114) target = $region12
      $region11: #{tpu_custom_call.1} parent=5 // pred_region
        %s118 = ssub.s32 %s15, 1
        // Predicated region
        $region13: #{tpu_custom_call.1} parent=11 // pred_check
          %p119 = pneg %p48
        $region14: #{tpu_custom_call.1} parent=11 // pred_check_branch
          %121 = sbr.rel (%p119) target = $region16
        $region15: #{tpu_custom_call.1} parent=11 // pred_region
          %s123 = ssub.s32 32, 32
          %124 = vsyncadd [#allocation5], %s123
          %127 = dma.hbm_to_smem %s0, 32, [#allocation2], [#allocation5]
        $region16: #{tpu_custom_call.1} parent=11 // pred_fallthru
          _
      $region12: #{tpu_custom_call.1} parent=5 // pred_fallthru
        _
      %p128 = scmp.lt.s32.totalorder %s15, 2
      // Predicated region
      $region17: #{tpu_custom_call.1} parent=5 // pred_check
        %p129 = pneg %p128
      $region18: #{tpu_custom_call.1} parent=5 // pred_check_branch
        %131 = sbr.rel (%p129) target = $region20
      $region19: #{tpu_custom_call.1} parent=5 // pred_region
        // Predicated region
        $region21: #{tpu_custom_call.1} parent=19 // pred_check
          %p132 = pneg %p70
        $region22: #{tpu_custom_call.1} parent=19 // pred_check_branch
          %134 = sbr.rel (%p132) target = $region24
        $region23: #{tpu_custom_call.1} parent=19 // pred_region
          %s135 = sand.u32 %s60, 1
          %s136 = scalar_lea.sflag [#allocation3], %s135
          %s137 = sand.u32 %s60, 1
          %s138 = smul.addr %s137, 48
          %s139 = scalar_lea.vmem [#allocation6], %s138
          %s141 = ssub.s32 768, 768
          %142 = vsyncadd %s136, %s141
          %s143 = smul.addr %s23, 2
          %s144 = smul.addr %s22, 6
          %s145 = sadd.s32 %s143, %s144
          %s146 = smul.addr %s145, 128
          %s147 = scalar_lea.hbm %s1, %s146
          %s148 = sshll.u32 %s139, 4
          %s149 = int_to_ptr.vmem [resolvable:$true] %s148
          %154 = dma.hbm_to_vmem [thread:$0]  %s147, 768, %s149, %s136, 256, 256, 16
        $region24: #{tpu_custom_call.1} parent=19 // pred_fallthru
          _
      $region20: #{tpu_custom_call.1} parent=5 // pred_fallthru
        _
      %p155 = scmp.le.s32.totalorder 1, %s15
      %p156 = scmp.lt.s32.totalorder %s15, 3
      %p157 = pnand %p155, %p156
      %p158 = pneg %p157
      // Predicated region
      $region25: #{tpu_custom_call.1} parent=5 // pred_check
        _
      $region26: #{tpu_custom_call.1} parent=5 // pred_check_branch
        %160 = sbr.rel (%p157) target = $region28
      $region27: #{tpu_custom_call.1} parent=5 // pred_region
        %s161 = ssub.s32 %s15, 1
        // Predicated region
        $region29: #{tpu_custom_call.1} parent=27 // pred_check
          %p162 = pneg %p48
        $region30: #{tpu_custom_call.1} parent=27 // pred_check_branch
          %164 = sbr.rel (%p162) target = $region32
        $region31: #{tpu_custom_call.1} parent=27 // pred_region
          %165 = dma.done [#allocation5], 32
        $region32: #{tpu_custom_call.1} parent=27 // pred_fallthru
          _
        %s166 = sand.u32 %s63, 1
        %s167 = scalar_lea.sflag [#allocation3], %s166
        %s168 = sand.u32 %s63, 1
        %s169 = smul.addr %s168, 48
        %s170 = scalar_lea.vmem [#allocation6], %s169
        // Predicated region
        $region33: #{tpu_custom_call.1} parent=27 // pred_check
          %p171 = pneg %p76
        $region34: #{tpu_custom_call.1} parent=27 // pred_check_branch
          %173 = sbr.rel (%p171) target = $region36
        $region35: #{tpu_custom_call.1} parent=27 // pred_region
          %174 = dma.done %s167, 768
        $region36: #{tpu_custom_call.1} parent=27 // pred_fallthru
          _
        %175 = sfence
        %p176 = pneg %p48
        %p177 = pneg %p45
        %s178 = sand.u32 %s63, 1
        %s179 = scalar_lea.sflag [#allocation3], %s178
        %s180 = sand.u32 %s63, 1
        %s181 = smul.addr %s180, 48
        %s182 = scalar_lea.vmem [#allocation6], %s181
        %p183 = pneg %p76
        %p184 = pneg %p73
        %p185 = pneg %p104
        %p186 = pneg %p101
        %s187 = sand.u32 %s91, 1
        %s188 = scalar_lea.sflag [#allocation4], %s187
        %s189 = sand.u32 %s91, 1
        %s190 = smul.addr %s189, 32
        %s191 = scalar_lea.vmem [#allocation7], %s190
        %v192 = vld [vmem:[%s170] sm:$0xff]
        %v193 = vld [vmem:[%s170 + $0x8] sm:$0xff]
        %s194 = scalar_lea.vmem %s170, 16 [#allocation6]
        %v195 = vld [vmem:[%s194] sm:$0xff]
        %v196 = vld [vmem:[%s194 + $0x8] sm:$0xff]
        %s197 = scalar_lea.vmem %s170, 32 [#allocation6]
        %v198 = vld [vmem:[%s197] sm:$0xff]
        %v199 = vld [vmem:[%s197 + $0x8] sm:$0xff]
        %s200 = smul.u32 %s24, 128
        %s201 = sld [smem:[#allocation2 + %s200]]
        %s202 = sadd.s32 %s200, 1
        %s203 = sld [smem:[#allocation2 + %s202]]
        %s204 = sadd.s32 %s200, 2
        %s205 = sld [smem:[#allocation2 + %s204]]
        %s206 = sadd.s32 %s200, 3
        %s207 = sld [smem:[#allocation2 + %s206]]
        %s208 = sadd.s32 %s200, 4
        %s209 = sld [smem:[#allocation2 + %s208]]
        %s210 = sadd.s32 %s200, 5
        %s211 = sld [smem:[#allocation2 + %s210]]
        %s212 = sadd.s32 %s200, 6
        %s213 = sld [smem:[#allocation2 + %s212]]
        %s214 = sadd.s32 %s200, 7
        %s215 = sld [smem:[#allocation2 + %s214]]
        %s216 = sadd.s32 %s200, 8
        %s217 = sld [smem:[#allocation2 + %s216]]
        %s218 = sadd.s32 %s200, 9
        %s219 = sld [smem:[#allocation2 + %s218]]
        %s220 = sadd.s32 %s200, 10
        %s221 = sld [smem:[#allocation2 + %s220]]
        %s222 = sadd.s32 %s200, 11
        %s223 = sld [smem:[#allocation2 + %s222]]
        %s224 = sadd.s32 %s200, 12
        %s225 = sld [smem:[#allocation2 + %s224]]
        %s226 = sadd.s32 %s200, 13
        %s227 = sld [smem:[#allocation2 + %s226]]
        %s228 = sadd.s32 %s200, 14
        %s229 = sld [smem:[#allocation2 + %s228]]
        %s230 = sadd.s32 %s200, 15
        %s231 = sld [smem:[#allocation2 + %s230]]
        %s232 = sadd.s32 %s200, 16
        %s233 = sld [smem:[#allocation2 + %s232]]
        %s234 = sadd.s32 %s200, 17
        %s235 = sld [smem:[#allocation2 + %s234]]
        %v236 = vstv %s201
        %v237 = vmul.f32 %v236, %v192
        %v238 = vmul.f32 %v236, %v193
        %v239 = vstv %s203
        %v240 = vmul.f32 %v239, %v195
        %v241 = vmul.f32 %v239, %v196
        %v242 = vadd.f32 %v237, %v240
        %v243 = vadd.f32 %v238, %v241
        %v244 = vstv %s205
        %v245 = vmul.f32 %v244, %v198
        %v246 = vmul.f32 %v244, %v199
        %v247 = vadd.f32 %v242, %v245
        %v248 = vadd.f32 %v243, %v246
        %v249 = vstv %s219
        %v250 = vadd.f32 %v247, %v249
        %v251 = vadd.f32 %v248, %v249
        %v252 = vstv %s207
        %v253 = vmul.f32 %v252, %v192
        %v254 = vmul.f32 %v252, %v193
        %v255 = vstv %s209
        %v256 = vmul.f32 %v255, %v195
        %v257 = vmul.f32 %v255, %v196
        %v258 = vadd.f32 %v253, %v256
        %v259 = vadd.f32 %v254, %v257
        %v260 = vstv %s211
        %v261 = vmul.f32 %v260, %v198
        %v262 = vmul.f32 %v260, %v199
        %v263 = vadd.f32 %v258, %v261
        %v264 = vadd.f32 %v259, %v262
        %v265 = vstv %s221
        %v266 = vadd.f32 %v263, %v265
        %v267 = vadd.f32 %v264, %v265
        %v268 = vstv %s213
        %v269 = vmul.f32 %v268, %v192
        %v270 = vmul.f32 %v268, %v193
        %v271 = vstv %s215
        %v272 = vmul.f32 %v271, %v195
        %v273 = vmul.f32 %v271, %v196
        %v274 = vadd.f32 %v269, %v272
        %v275 = vadd.f32 %v270, %v273
        %v276 = vstv %s217
        %v277 = vmul.f32 %v276, %v198
        %v278 = vmul.f32 %v276, %v199
        %v279 = vadd.f32 %v274, %v277
        %v280 = vadd.f32 %v275, %v278
        %v281 = vstv %s223
        %v282 = vadd.f32 %v279, %v281
        %v283 = vadd.f32 %v280, %v281
        %v284 = vrcp.pop %v282
        %v285 = vmul.f32 %v250, %v284
        %v286 = vrcp.pop %v283
        %v287 = vmul.f32 %v251, %v286
        %v288 = vmul.f32 %v266, %v284
        %v289 = vmul.f32 %v267, %v286
        %v290 = vstv %s225
        %v291 = vmul.f32 %v290, %v285
        %v292 = vmul.f32 %v290, %v287
        %v293 = vstv %s227
        %v294 = vmul.f32 %v293, %v288
        %v295 = vmul.f32 %v293, %v289
        %v296 = vadd.f32 %v291, %v294
        %v297 = vadd.f32 %v292, %v295
        %v298 = vstv %s233
        %v299 = vadd.f32 %v296, %v298
        %v300 = vadd.f32 %v297, %v298
        %301 = vst [vmem:[%s191] sm:$0xff] %v299
        %302 = vst [vmem:[%s191 + $0x8] sm:$0xff] %v300
        %v303 = vstv %s229
        %v304 = vmul.f32 %v303, %v285
        %v305 = vmul.f32 %v303, %v287
        %v306 = vstv %s231
        %v307 = vmul.f32 %v306, %v288
        %v308 = vmul.f32 %v306, %v289
        %v309 = vadd.f32 %v304, %v307
        %v310 = vadd.f32 %v305, %v308
        %v311 = vstv %s235
        %v312 = vadd.f32 %v309, %v311
        %v313 = vadd.f32 %v310, %v311
        %s314 = scalar_lea.vmem %s191, 16 [#allocation7]
        %315 = vst [vmem:[%s314] sm:$0xff] %v312
        %316 = vst [vmem:[%s314 + $0x8] sm:$0xff] %v313
        %s317 = sand.u32 %s91, 1
        %s318 = scalar_lea.sflag [#allocation4], %s317
        %s319 = sand.u32 %s91, 1
        %s320 = smul.addr %s319, 32
        %s321 = scalar_lea.vmem [#allocation7], %s320
        // Predicated region
        $region37: #{tpu_custom_call.1} parent=27 // pred_check
          %p322 = pneg %p101
        $region38: #{tpu_custom_call.1} parent=27 // pred_check_branch
          %324 = sbr.rel (%p322) target = $region40
        $region39: #{tpu_custom_call.1} parent=27 // pred_region
          %s326 = ssub.s32 512, 512
          %327 = vsyncadd %s318, %s326
          %s328 = smul.addr %s25, 2
          %s329 = smul.addr %s24, 4
          %s330 = sadd.s32 %s328, %s329
          %s331 = smul.addr %s330, 128
          %s332 = scalar_lea.hbm %s2, %s331
          %s333 = sshll.u32 %s321, 4
          %s334 = int_to_ptr.vmem [resolvable:$true] %s333
          %339 = dma.vmem_to_hbm [thread:$0]  %s334, 512, %s332, %s318, 256, 256, 16
        $region40: #{tpu_custom_call.1} parent=27 // pred_fallthru
          _
      $region28: #{tpu_custom_call.1} parent=5 // pred_fallthru
        _
      %p340 = scmp.le.s32.totalorder 2, %s15
      // Predicated region
      $region41: #{tpu_custom_call.1} parent=5 // pred_check
        %p341 = pneg %p340
      $region42: #{tpu_custom_call.1} parent=5 // pred_check_branch
        %343 = sbr.rel (%p341) target = $region44
      $region43: #{tpu_custom_call.1} parent=5 // pred_region
        %s344 = ssub.s32 %s15, 2
        // Predicated region
        $region45: #{tpu_custom_call.1} parent=43 // pred_check
          %p345 = pneg %p107
        $region46: #{tpu_custom_call.1} parent=43 // pred_check_branch
          %347 = sbr.rel (%p345) target = $region48
        $region47: #{tpu_custom_call.1} parent=43 // pred_region
          %s348 = sand.u32 %s92, 1
          %s349 = scalar_lea.sflag [#allocation4], %s348
          %s350 = sand.u32 %s92, 1
          %s351 = smul.addr %s350, 32
          %s352 = scalar_lea.vmem [#allocation7], %s351
          %353 = dma.done %s349, 512
        $region48: #{tpu_custom_call.1} parent=43 // pred_fallthru
          _
      $region44: #{tpu_custom_call.1} parent=5 // pred_fallthru
        _
    $region6: #{tpu_custom_call.1} parent=1 // loop_footer
      %s19 = sadd.s32 1, %s15
    $region7: #{tpu_custom_call.1} parent=1 // loop_footer_branch
      %14 = sbr.rel target = $region3
    $region8: #{tpu_custom_call.1} parent=1 // loop_exit
      _
    %354 = vsyncpa [#allocation3], 1
    %s355 = scalar_lea.sflag [#allocation3], 1
    %356 = vsyncpa %s355, 1
    %357 = vsyncpa [#allocation4], 1
    %s358 = scalar_lea.sflag [#allocation4], 1
    %359 = vsyncpa %s358, 1
    %360 = vsyncpa [#allocation5], 1
    %s361 = scalar_lea.sflag [#allocation5], 1
    %362 = vsyncpa %s361, 1

</llo_original>
